<compile_context>
chip_gen: v7x
topology: tpu7x:2x2x1
jax: 0.10.0
libtpu: 0.0.40
codegen_flags: <defaults>
</compile_context>

<pallas_src>
import functools

import jax
import jax.numpy as jnp
from jax import lax
from jax.experimental import pallas as pl
from jax.experimental.pallas import tpu as pltpu


def _round_up(x, m):
    return (x + m - 1) // m * m


def _vmem_limit_bytes(resident_bytes):
    # 2x for double-buffered pipeline copies + headroom for compiler
    # temporaries; clamp well below v7x's 64 MiB physical VMEM.
    return int(min(max(2 * resident_bytes + (2 << 20), 8 << 20), 56 << 20))


# ---------------------------------------------------------------------------
# Shared head: +b1 -> dropout(identity) -> relu -> BatchNorm1d -> fc2.
# ---------------------------------------------------------------------------
def _head(pooled, b1, gamma, beta, w2, b2, batch_gt_one, eps):
    h = pooled + b1                                   # [B, Hp] f32
    # TODO(synk): dropout treated as identity (eval mode); training-mode RNG
    # masking is not implemented.  Note the emb@W1 fold is only valid while
    # dropout is identity.
    h = jnp.maximum(h, 0.0)
    if batch_gt_one:
        # BatchNorm1d with batch statistics (biased variance), as the PyTorch
        # forward does for B > 1; skipped entirely for B == 1.
        mean = jnp.mean(h, axis=0, keepdims=True)
        var = jnp.mean((h - mean) ** 2, axis=0, keepdims=True)
        h = (h - mean) * lax.rsqrt(var + eps) * gamma + beta
    # fc2 in f32: the kernel is gather/launch bound, bf16 buys nothing here.
    return jnp.dot(h, w2, preferred_element_type=jnp.float32) + b2


# ---------------------------------------------------------------------------
# Path A: whole folded table resident in VMEM (small vocab).
# ---------------------------------------------------------------------------
def seqvec_vmem_kernel(tok_ref,          # VMEM [B, S] int32
                       wfold_ref,        # VMEM [Vp, Hp]
                       b1_ref, gamma_ref, beta_ref,    # VMEM [1, Hp] f32
                       w2_ref,           # VMEM [Hp, Op] f32
                       b2_ref,           # VMEM [1, Op] f32
                       out_ref,          # VMEM [B, Op] f32
                       *, seq_len, batch_gt_one, eps):
    tok = tok_ref[...]
    bsz, s = tok.shape
    vp = wfold_ref.shape[0]
    # counts[b, v] = #occurrences of token v in row b (one-hot compare against
    # a lane iota, reduced over the sequence axis).  Sized for small vocab/seq
    # only -- gated in the wrapper.
    # TODO(synk): for small-vocab / very long sequences, build counts chunked
    # over S (or use the streaming path) instead of one [B, S, Vp] compare.
    vocab_iota = lax.broadcasted_iota(jnp.int32, (bsz, s, vp), 2)
    counts = jnp.sum((tok[:, :, None] == vocab_iota).astype(jnp.float32), axis=1)
    # Mean-pool over seq == (counts @ W_fold) / S by linearity of fc1.  One MXU
    # matmul replaces B*S per-row gather DMAs.  The pad_idx row of W_fold is
    # all-zero, so pad tokens contribute nothing while S stays the divisor,
    # exactly as in the reference.
    pooled = jnp.dot(counts, wfold_ref[...].astype(jnp.float32),
                     preferred_element_type=jnp.float32) * (1.0 / seq_len)
    out_ref[...] = _head(pooled, b1_ref[...], gamma_ref[...], beta_ref[...],
                         w2_ref[...], b2_ref[...], batch_gt_one, eps)


# ---------------------------------------------------------------------------
# Path B: HBM-resident table, chunked double-buffered row gather.
# ---------------------------------------------------------------------------
def seqvec_stream_kernel(tok_ref,        # SMEM [B*Sp] int32 (scalar prefetch)
                         wfold_hbm,      # HBM  [Vp, Hp]  (emb @ W1, padded)
                         b1_ref, gamma_ref, beta_ref,   # VMEM [1, Hp] f32
                         w2_ref,         # VMEM [Hp, Op] f32
                         b2_ref,         # VMEM [1, Op] f32
                         out_ref,        # VMEM [B, Op] f32
                         gbuf,           # VMEM [2, CHUNK, Hp] gather ring
                         gsem,           # DMA sems [2, CHUNK] fixed ring
                         *, batch, seq_len, seq_pad, chunk, pad_idx,
                         batch_gt_one, eps):
    n_chunks = seq_pad // chunk
    hp = gbuf.shape[-1]

    def issue(base, c, slot):
        # Gather one chunk of folded-embedding rows into gbuf[slot].  Row
        # addresses come from SMEM, so this is pure scalar + DMA-descriptor
        # work.  pad_idx rows are skipped (their folded row is all-zero).
        for j in range(chunk):
            t = tok_ref[base + c * chunk + j]

            @pl.when(t != pad_idx)
            def _():
                pltpu.make_async_copy(
                    wfold_hbm.at[pl.ds(t, 1), :],
                    gbuf.at[slot, pl.ds(j, 1), :],
                    gsem.at[slot, j]).start()

    pooled_rows = []
    for b in range(batch):                    # static unroll over batch rows
        base = b * seq_pad
        issue(base, 0, 0)                     # prologue: prefetch chunk 0

        def chunk_step(c, acc):
            slot = c & 1
            # Drain this chunk's DMAs; zero rows whose DMA was skipped so
            # stale ring contents never reach the sum.
            for j in range(chunk):
                t = tok_ref[base + c * chunk + j]

                @pl.when(t != pad_idx)
                def _():
                    pltpu.make_async_copy(
                        wfold_hbm.at[pl.ds(0, 1), :],
                        gbuf.at[slot, pl.ds(j, 1), :],
                        gsem.at[slot, j]).wait()

                @pl.when(t == pad_idx)
                def _():
                    gbuf[slot, pl.ds(j, 1), :] = jnp.zeros((1, hp), gbuf.dtype)

            # Prefetch the next chunk into the other ring slot while the VPU
            # reduces this one (DMA / compute overlap, bounded in-flight DMAs).
            @pl.when(c + 1 < n_chunks)
            def _():
                issue(base, c + 1, 1 - slot)

            return acc + jnp.sum(gbuf[slot].astype(jnp.float32),
                                 axis=0, keepdims=True)

        pooled_rows.append(
            lax.fori_loop(0, n_chunks, chunk_step,
                          jnp.zeros((1, hp), jnp.float32)))

    # Mean over the true sequence length (pad / padded-to-chunk rows are zero).
    pooled = jnp.concatenate(pooled_rows, axis=0) * (1.0 / seq_len)
    out_ref[...] = _head(pooled, b1_ref[...], gamma_ref[...], beta_ref[...],
                         w2_ref[...], b2_ref[...], batch_gt_one, eps)


# ---------------------------------------------------------------------------
# Wrapper
# ---------------------------------------------------------------------------
def fold_and_pad_params(params, table_dtype=jnp.float32):
    """One-time weight prep (do NOT redo per call).

    Folds embedding lookup + mean-pool with fc1 (all linear; relu comes
    after): W_fold = emb @ W1 -> [Vp, Hp].  Pads vocab/hid/out dims to
    TPU-friendly multiples so in-kernel matmuls and stores are lane-dense.
    Pass table_dtype=jnp.bfloat16 at production vocab sizes to halve gather
    DMA bytes and ring-buffer VMEM (accumulation stays f32 in the kernel).
    """
    emb = params["emb"].astype(jnp.float32)
    w1 = params["w1"].astype(jnp.float32)
    v = emb.shape[0]
    h = w1.shape[1]
    o = params["w2"].shape[1]
    vp = _round_up(v, 128)
    hp = _round_up(h, 128)
    op = _round_up(o, 128)
    wfold = jnp.dot(emb, w1, precision=jax.lax.Precision.HIGHEST)      # [V, H]
    wfold = jnp.pad(wfold, ((0, vp - v), (0, hp - h))).astype(table_dtype)
    return dict(
        wfold=wfold,
        b1=jnp.pad(params["b1"], (0, hp - h)).reshape(1, hp).astype(jnp.float32),
        gamma=jnp.pad(params["gamma"], (0, hp - h),
                      constant_values=1.0).reshape(1, hp).astype(jnp.float32),
        beta=jnp.pad(params["beta"], (0, hp - h)).reshape(1, hp).astype(jnp.float32),
        w2=jnp.pad(params["w2"], ((0, hp - h), (0, op - o))).astype(jnp.float32),
        b2=jnp.pad(params["b2"], (0, op - o)).reshape(1, op).astype(jnp.float32),
        out_dim=o,
    )


def seqvec_forward(text, folded, *, pad_idx=0, eps=1e-5, force_stream=False,
                   chunk=8, vmem_table_budget=8 << 20, onehot_budget=8 << 20):
    """text: [seq_len, batch] int32 token ids (PyTorch layout)."""
    tok = text.T.astype(jnp.int32)                       # [B, S]
    B, S = tok.shape
    wfold = folded["wfold"]
    Vp, Hp = wfold.shape
    Op = folded["w2"].shape[1]
    vmem = pl.BlockSpec(memory_space=pltpu.MemorySpace.VMEM)

    table_bytes = Vp * Hp * wfold.dtype.itemsize
    onehot_bytes = B * S * Vp * 4
    aux_bytes = (3 * Hp + Hp * Op + Op + B * Op + B * S) * 4

    use_vmem_table = (not force_stream
                      and table_bytes <= vmem_table_budget
                      and onehot_bytes <= onehot_budget)

    if use_vmem_table:
        kernel = functools.partial(seqvec_vmem_kernel, seq_len=S,
                                   batch_gt_one=(B > 1), eps=eps)
        out_padded = pl.pallas_call(
            kernel,
            out_shape=jax.ShapeDtypeStruct((B, Op), jnp.float32),
            in_specs=[vmem] * 7,
            out_specs=vmem,
            compiler_params=pltpu.CompilerParams(
                vmem_limit_bytes=_vmem_limit_bytes(
                    table_bytes + onehot_bytes + aux_bytes)),
        )(tok, wfold, folded["b1"], folded["gamma"], folded["beta"],
          folded["w2"], folded["b2"])
    else:
        s_pad = _round_up(S, chunk)
        tok_pad = jnp.pad(tok, ((0, 0), (0, s_pad - S)),
                          constant_values=pad_idx)
        kernel = functools.partial(
            seqvec_stream_kernel, batch=B, seq_len=S, seq_pad=s_pad,
            chunk=chunk, pad_idx=pad_idx, batch_gt_one=(B > 1), eps=eps)
        gbuf_bytes = 2 * chunk * Hp * wfold.dtype.itemsize
        out_padded = pl.pallas_call(
            kernel,
            out_shape=jax.ShapeDtypeStruct((B, Op), jnp.float32),
            grid_spec=pltpu.PrefetchScalarGridSpec(
                num_scalar_prefetch=1,                   # token ids -> SMEM
                grid=(1,),
                in_specs=[
                    pl.BlockSpec(memory_space=pl.ANY),   # folded table in HBM
                    vmem, vmem, vmem, vmem, vmem,
                ],
                out_specs=vmem,
                scratch_shapes=[
                    pltpu.VMEM((2, chunk, Hp), wfold.dtype),   # gather ring
                    pltpu.SemaphoreType.DMA((2, chunk)),       # fixed sem ring
                ]),
            compiler_params=pltpu.CompilerParams(
                dimension_semantics=("arbitrary",),
                vmem_limit_bytes=_vmem_limit_bytes(gbuf_bytes + aux_bytes)),
            # TODO(synk): at production batch sizes add a batch-tile grid axis
            # marked "parallel" (v7x has 2 TensorCores) plus a separate
            # global-stats pass for BatchNorm, and feed fc2 >=256-row M tiles;
            # at B=2 the call is launch/latency bound so it is omitted here.
        )(tok_pad.reshape(-1), wfold, folded["b1"], folded["gamma"],
          folded["beta"], folded["w2"], folded["b2"])

    return out_padded[:, :folded["out_dim"]]


# ---------------------------------------------------------------------------
# Param init + pure-JAX reference (mirrors the PyTorch module).
# ---------------------------------------------------------------------------
def init_params(key, vocab_size, embedding_dim, hid_dim, output_dim, pad_idx):
    k = jax.random.split(key, 5)
    emb = jax.random.normal(k[0], (vocab_size, embedding_dim), jnp.float32)
    emb = emb.at[pad_idx].set(0.0)           # nn.Embedding padding_idx row = 0
    lim1 = 1.0 / float(embedding_dim) ** 0.5
    w1 = jax.random.uniform(k[1], (embedding_dim, hid_dim), jnp.float32, -lim1, lim1)
    b1 = jax.random.uniform(k[2], (hid_dim,), jnp.float32, -lim1, lim1)
    gamma = jnp.ones((hid_dim,), jnp.float32)
    beta = jnp.zeros((hid_dim,), jnp.float32)
    lim2 = 1.0 / float(hid_dim) ** 0.5
    w2 = jax.random.uniform(k[3], (hid_dim, output_dim), jnp.float32, -lim2, lim2)
    b2 = jax.random.uniform(k[4], (output_dim,), jnp.float32, -lim2, lim2)
    return dict(emb=emb, w1=w1, b1=b1, gamma=gamma, beta=beta, w2=w2, b2=b2)


def reference_forward(text, params, eps=1e-5):
    """Pure-JAX reference mirroring the PyTorch forward (eval-mode dropout)."""
    embedded = params["emb"][text]                       # [S, B, E]
    embedded = jnp.transpose(embedded, (1, 0, 2))        # [B, S, E]
    pooled = jnp.mean(embedded, axis=1)                  # [B, E]
    h = pooled @ params["w1"] + params["b1"]
    h = jnp.maximum(h, 0.0)
    if h.shape[0] > 1:
        mean = jnp.mean(h, axis=0, keepdims=True)
        var = jnp.mean((h - mean) ** 2, axis=0, keepdims=True)
        h = (h - mean) / jnp.sqrt(var + eps) * params["gamma"] + params["beta"]
    return h @ params["w2"] + params["b2"]


if __name__ == "__main__":
    vocab_size, embedding_dim, hid_dim, output_dim = 32, 32, 32, 4
    pad_idx = 0
    seq_len, batch = 8, 2

    key = jax.random.PRNGKey(0)
    k_tok, k_par = jax.random.split(key)
    params = init_params(k_par, vocab_size, embedding_dim, hid_dim,
                         output_dim, pad_idx)
    # minval=0 so pad_idx tokens can occur -> exercises the pad-skip branch.
    text = jax.random.randint(k_tok, (seq_len, batch), 0, vocab_size, jnp.int32)

    folded = fold_and_pad_params(params)
    ref = reference_forward(text, params)

    # Path A: whole-table-in-VMEM (auto-selected at these sizes).
    out_vmem = jax.block_until_ready(seqvec_forward(text, folded, pad_idx=pad_idx))
    # Path B: chunked double-buffered HBM gather (forced, chunk=4 so the
    # prefetch-next / double-buffer branch is exercised at runtime).
    out_stream = jax.block_until_ready(
        seqvec_forward(text, folded, pad_idx=pad_idx, force_stream=True, chunk=4))

    assert out_vmem.shape == (batch, output_dim)
    assert out_stream.shape == (batch, output_dim)
    # All math is f32; tolerance kept conservative only for MXU pass-count
    # variation across chips (observed error is far smaller).
    assert jnp.allclose(out_vmem, ref, atol=2e-2, rtol=2e-2), (out_vmem, ref)
    assert jnp.allclose(out_stream, ref, atol=2e-2, rtol=2e-2), (out_stream, ref)
    print("KERNEL_OK")
</pallas_src>

<mosaic_0001>
module attributes {stable_mosaic.version = 11 : i64} {
  func.func @seqvec_vmem_kernel(%arg0: memref<2x8xi32, #tpu.memory_space<vmem>>, %arg1: memref<128x128xf32, #tpu.memory_space<vmem>>, %arg2: memref<1x128xf32, #tpu.memory_space<vmem>>, %arg3: memref<1x128xf32, #tpu.memory_space<vmem>>, %arg4: memref<1x128xf32, #tpu.memory_space<vmem>>, %arg5: memref<128x128xf32, #tpu.memory_space<vmem>>, %arg6: memref<1x128xf32, #tpu.memory_space<vmem>>, %arg7: memref<2x128xf32, #tpu.memory_space<vmem>>) attributes {dimension_semantics = [], scalar_prefetch = 0 : i64, scratch_operands = 0 : i64, tpu.core_type = #tpu.core_type<tc>} {
    %c0 = arith.constant 0 : index
    %c0_0 = arith.constant 0 : index
    %0 = vector.load %arg0[%c0, %c0_0] : memref<2x8xi32, #tpu.memory_space<vmem>>, vector<2x8xi32>
    %1 = tpu.iota {dimensions = array<i32: 2>} : vector<2x8x128xi32>
    %2 = vector.shape_cast %0 : vector<2x8xi32> to vector<2x8x1xi32>
    %3 = vector.broadcast %2 : vector<2x8x1xi32> to vector<2x8x128xi32>
    %4 = arith.cmpi eq, %3, %1 : vector<2x8x128xi32>
    %5 = arith.extui %4 : vector<2x8x128xi1> to vector<2x8x128xi32>
    %6 = arith.sitofp %5 : vector<2x8x128xi32> to vector<2x8x128xf32>
    %cst = arith.constant dense<0.000000e+00> : vector<2x128xf32>
    %7 = vector.multi_reduction <add>, %6, %cst [1] : vector<2x8x128xf32> to vector<2x128xf32>
    %c0_1 = arith.constant 0 : index
    %c0_2 = arith.constant 0 : index
    %8 = vector.load %arg1[%c0_1, %c0_2] : memref<128x128xf32, #tpu.memory_space<vmem>>, vector<128x128xf32>
    %cst_3 = arith.constant dense<0.000000e+00> : vector<2x128xf32>
    %9 = tpu.matmul %7, %8, %cst_3 {dimension_numbers = #tpu.dot_dimension_numbers<[1], [0], [0], [1], [0, 0, 1, 1], [], []>} : vector<2x128xf32>, vector<128x128xf32>, vector<2x128xf32> -> vector<2x128xf32>
    %cst_4 = arith.constant 1.250000e-01 : f32
    %10 = vector.broadcast %cst_4 : f32 to vector<2x128xf32>
    %11 = arith.mulf %9, %10 : vector<2x128xf32>
    %c0_5 = arith.constant 0 : index
    %c0_6 = arith.constant 0 : index
    %12 = vector.load %arg2[%c0_5, %c0_6] : memref<1x128xf32, #tpu.memory_space<vmem>>, vector<1x128xf32>
    %c0_7 = arith.constant 0 : index
    %c0_8 = arith.constant 0 : index
    %13 = vector.load %arg3[%c0_7, %c0_8] : memref<1x128xf32, #tpu.memory_space<vmem>>, vector<1x128xf32>
    %c0_9 = arith.constant 0 : index
    %c0_10 = arith.constant 0 : index
    %14 = vector.load %arg4[%c0_9, %c0_10] : memref<1x128xf32, #tpu.memory_space<vmem>>, vector<1x128xf32>
    %c0_11 = arith.constant 0 : index
    %c0_12 = arith.constant 0 : index
    %15 = vector.load %arg5[%c0_11, %c0_12] : memref<128x128xf32, #tpu.memory_space<vmem>>, vector<128x128xf32>
    %c0_13 = arith.constant 0 : index
    %c0_14 = arith.constant 0 : index
    %16 = vector.load %arg6[%c0_13, %c0_14] : memref<1x128xf32, #tpu.memory_space<vmem>>, vector<1x128xf32>
    %17 = vector.broadcast %12 : vector<1x128xf32> to vector<2x128xf32>
    %18 = arith.addf %11, %17 : vector<2x128xf32>
    %cst_15 = arith.constant 0.000000e+00 : f32
    %19 = vector.broadcast %cst_15 : f32 to vector<2x128xf32>
    %20 = arith.maximumf %18, %19 : vector<2x128xf32>
    %cst_16 = arith.constant dense<0.000000e+00> : vector<128xf32>
    %21 = vector.multi_reduction <add>, %20, %cst_16 [0] : vector<2x128xf32> to vector<128xf32>
    %22 = vector.shape_cast %21 : vector<128xf32> to vector<1x128xf32>
    %cst_17 = arith.constant 2.000000e+00 : f32
    %23 = vector.broadcast %cst_17 : f32 to vector<1x128xf32>
    %24 = arith.divf %22, %23 : vector<1x128xf32>
    %25 = vector.broadcast %24 : vector<1x128xf32> to vector<2x128xf32>
    %26 = arith.subf %20, %25 : vector<2x128xf32>
    %27 = arith.mulf %26, %26 : vector<2x128xf32>
    %cst_18 = arith.constant dense<0.000000e+00> : vector<128xf32>
    %28 = vector.multi_reduction <add>, %27, %cst_18 [0] : vector<2x128xf32> to vector<128xf32>
    %29 = vector.shape_cast %28 : vector<128xf32> to vector<1x128xf32>
    %cst_19 = arith.constant 2.000000e+00 : f32
    %30 = vector.broadcast %cst_19 : f32 to vector<1x128xf32>
    %31 = arith.divf %29, %30 : vector<1x128xf32>
    %32 = vector.broadcast %24 : vector<1x128xf32> to vector<2x128xf32>
    %33 = arith.subf %20, %32 : vector<2x128xf32>
    %cst_20 = arith.constant 9.99999974E-6 : f32
    %34 = vector.broadcast %cst_20 : f32 to vector<1x128xf32>
    %35 = arith.addf %31, %34 : vector<1x128xf32>
    %36 = math.rsqrt %35 : vector<1x128xf32>
    %37 = vector.broadcast %36 : vector<1x128xf32> to vector<2x128xf32>
    %38 = arith.mulf %33, %37 : vector<2x128xf32>
    %39 = vector.broadcast %13 : vector<1x128xf32> to vector<2x128xf32>
    %40 = arith.mulf %38, %39 : vector<2x128xf32>
    %41 = vector.broadcast %14 : vector<1x128xf32> to vector<2x128xf32>
    %42 = arith.addf %40, %41 : vector<2x128xf32>
    %cst_21 = arith.constant dense<0.000000e+00> : vector<2x128xf32>
    %43 = tpu.matmul %42, %15, %cst_21 {dimension_numbers = #tpu.dot_dimension_numbers<[1], [0], [0], [1], [0, 0, 1, 1], [], []>} : vector<2x128xf32>, vector<128x128xf32>, vector<2x128xf32> -> vector<2x128xf32>
    %44 = vector.broadcast %16 : vector<1x128xf32> to vector<2x128xf32>
    %45 = arith.addf %43, %44 : vector<2x128xf32>
    %c0_22 = arith.constant 0 : index
    %c0_23 = arith.constant 0 : index
    %46 = vector.load %arg7[%c0_22, %c0_23] : memref<2x128xf32, #tpu.memory_space<vmem>>, vector<2x128xf32>
    tpu.vector_store %arg7[%c0_22, %c0_23], %45 {strides = array<i32>} : memref<2x128xf32, #tpu.memory_space<vmem>>, vector<2x128xf32>,
    return
  }
}

</mosaic_0001>

<llo_original>
// kernel: tpu_custom_call.1
$region0: #{tpu_custom_call.1}
  #allocation0 [shape = 'u32[]', space=smem, size = 0x4, offset = 0x4, fixed_abs, tag = 'smem constant byte address 0x4 - core index']
  #allocation1 [shape = 'u32[144,128]{1,0:T(1,128)}', space=vmem, size = 0x12000, scoped, tag = 'internal scratch']
  %s0 = inlined_call_operand.hbm [shape: s32[2,8], index: 0, kind: input, shape index: {}]
  %s1 = inlined_call_operand.hbm [shape: f32[128,128], index: 1, kind: input, shape index: {}]
  %s2 = inlined_call_operand.vmem [shape: f32[1,128], index: 2, kind: input, shape index: {}]
  %s3 = inlined_call_operand.vmem [shape: f32[1,128], index: 3, kind: input, shape index: {}]
  %s4 = inlined_call_operand.vmem [shape: f32[1,128], index: 4, kind: input, shape index: {}]
  %s5 = inlined_call_operand.hbm [shape: f32[128,128], index: 5, kind: input, shape index: {}]
  %s6 = inlined_call_operand.vmem [shape: f32[1,128], index: 6, kind: input, shape index: {}]
  %s7 = inlined_call_operand.hbm [shape: f32[2,128], index: 7, kind: output, shape index: {}]
  %s8 = sld [smem:[#allocation0]]
  $region50: #{tpu_custom_call.1} parent=0
    _
  %s10 = ssub.s32 1, %s8
  %s11 = scalar_select 0, %s10, %s8
  $region1: #{tpu_custom_call.1} parent=0
    #allocation2 [shape = 'u8[1024]{0}', space=vmem, size = 0x400, scoped, tag = 'input window, operand 0, single buffered']
    #allocation3 [shape = 's32[1]{0}', space=sflag, size = 0x4, scoped, tag = 'scoped memory for tpu_custom_call.1']
    #allocation4 [shape = 's32[1]{0}', space=sflag, size = 0x4, scoped, tag = 'scoped memory for tpu_custom_call.1']
    #allocation5 [shape = 'u8[65536]{0}', space=vmem, size = 0x10000, scoped, tag = 'input window, operand 1, single buffered']
    #allocation6 [shape = 's32[1]{0}', space=sflag, size = 0x4, scoped, tag = 'scoped memory for tpu_custom_call.1']
    #allocation7 [shape = 'u8[65536]{0}', space=vmem, size = 0x10000, scoped, tag = 'input window, operand 5, single buffered']
    #allocation8 [shape = 'u8[1024]{0}', space=vmem, size = 0x400, scoped, tag = 'output window, operand 0, single buffered']
    %12 = vsyncpa [#allocation3], 0
    %13 = vsyncpa [#allocation6], 0
    %14 = vsyncpa [#allocation4], 0
    // Predicated region
    $region2: #{tpu_custom_call.1} parent=1 // pred_check
      _
    $region3: #{tpu_custom_call.1} parent=1 // pred_check_branch
      %16 = sbr.rel (0) target = $region5
    $region4: #{tpu_custom_call.1} parent=1 // pred_region
      %s18 = ssub.s32 32, 32
      %19 = vsyncadd [#allocation3], %s18
      %s21 = sshll.u32 [#allocation2], 4
      %s22 = int_to_ptr.vmem [resolvable:$true] %s21
      %24 = dma.hbm_to_vmem [thread:$0]  %s0, 32, %s22, [#allocation3]
    $region5: #{tpu_custom_call.1} parent=1 // pred_fallthru
      _
    // Predicated region
    $region6: #{tpu_custom_call.1} parent=1 // pred_check
      _
    $region7: #{tpu_custom_call.1} parent=1 // pred_check_branch
      %26 = sbr.rel (0) target = $region9
    $region8: #{tpu_custom_call.1} parent=1 // pred_region
      %s28 = ssub.s32 2048, 2048
      %29 = vsyncadd [#allocation6], %s28
      %s30 = sshll.u32 [#allocation5], 4
      %s31 = int_to_ptr.vmem [resolvable:$true] %s30
      %36 = dma.hbm_to_vmem [thread:$0]  %s1, 2048, %s31, [#allocation6], 128, 128, 8
    $region9: #{tpu_custom_call.1} parent=1 // pred_fallthru
      _
    // Predicated region
    $region10: #{tpu_custom_call.1} parent=1 // pred_check
      _
    $region11: #{tpu_custom_call.1} parent=1 // pred_check_branch
      %38 = sbr.rel (0) target = $region13
    $region12: #{tpu_custom_call.1} parent=1 // pred_region
      _
    $region13: #{tpu_custom_call.1} parent=1 // pred_fallthru
      _
    // Predicated region
    $region14: #{tpu_custom_call.1} parent=1 // pred_check
      _
    $region15: #{tpu_custom_call.1} parent=1 // pred_check_branch
      %40 = sbr.rel (0) target = $region17
    $region16: #{tpu_custom_call.1} parent=1 // pred_region
      _
    $region17: #{tpu_custom_call.1} parent=1 // pred_fallthru
      _
    // Predicated region
    $region18: #{tpu_custom_call.1} parent=1 // pred_check
      _
    $region19: #{tpu_custom_call.1} parent=1 // pred_check_branch
      %42 = sbr.rel (0) target = $region21
    $region20: #{tpu_custom_call.1} parent=1 // pred_region
      _
    $region21: #{tpu_custom_call.1} parent=1 // pred_fallthru
      _
    // Predicated region
    $region22: #{tpu_custom_call.1} parent=1 // pred_check
      _
    $region23: #{tpu_custom_call.1} parent=1 // pred_check_branch
      %44 = sbr.rel (0) target = $region25
    $region24: #{tpu_custom_call.1} parent=1 // pred_region
      %s46 = ssub.s32 2048, 2048
      %47 = vsyncadd [#allocation6], %s46
      %s48 = sshll.u32 [#allocation7], 4
      %s49 = int_to_ptr.vmem [resolvable:$true] %s48
      %54 = dma.hbm_to_vmem [thread:$0]  %s5, 2048, %s49, [#allocation6], 128, 128, 8
    $region25: #{tpu_custom_call.1} parent=1 // pred_fallthru
      _
    // Predicated region
    $region26: #{tpu_custom_call.1} parent=1 // pred_check
      _
    $region27: #{tpu_custom_call.1} parent=1 // pred_check_branch
      %56 = sbr.rel (0) target = $region29
    $region28: #{tpu_custom_call.1} parent=1 // pred_region
      _
    $region29: #{tpu_custom_call.1} parent=1 // pred_fallthru
      _
    // Predicated region
    $region30: #{tpu_custom_call.1} parent=1 // pred_check
      _
    $region31: #{tpu_custom_call.1} parent=1 // pred_check_branch
      %58 = sbr.rel (0) target = $region33
    $region32: #{tpu_custom_call.1} parent=1 // pred_region
      %59 = dma.done [#allocation3], 32
    $region33: #{tpu_custom_call.1} parent=1 // pred_fallthru
      _
    // Predicated region
    $region34: #{tpu_custom_call.1} parent=1 // pred_check
      _
    $region35: #{tpu_custom_call.1} parent=1 // pred_check_branch
      %61 = sbr.rel (0) target = $region37
    $region36: #{tpu_custom_call.1} parent=1 // pred_region
      %62 = dma.done [#allocation6], 2048
    $region37: #{tpu_custom_call.1} parent=1 // pred_fallthru
      _
    // Predicated region
    $region38: #{tpu_custom_call.1} parent=1 // pred_check
      _
    $region39: #{tpu_custom_call.1} parent=1 // pred_check_branch
      %64 = sbr.rel (0) target = $region41
    $region40: #{tpu_custom_call.1} parent=1 // pred_region
      %65 = dma.done [#allocation6], 2048
    $region41: #{tpu_custom_call.1} parent=1 // pred_fallthru
      _
    %v66 = vld [vmem:[#allocation2] sm:$0x3]
    %v67 = vlaneseq
    %v68 = vand.u32 %v67, 127
    %v69 = vlaneseq
    %v70 = vshrl.u32 %v69, 7
    %v71 = vsub.s32 0, %v70
    %v72 = vrot.slane %v66, %v71
    %74 = vbcast.lane.b32.xlu0 %v72, 256
    %v75 = vpop.permute.xlu0 %74
    %v76 = vlaneseq
    %v77 = vshrl.u32 %v76, 7
    %v78 = vsub.s32 1, %v77
    %v79 = vrot.slane %v66, %v78
    %81 = vbcast.lane.b32.xlu0 %v79, 256
    %v82 = vpop.permute.xlu0 %81
    %vm83 = vcmp.eq.s32.totalorder %v75, %v68
    %vm84 = vcmp.eq.s32.totalorder %v82, %v68
    %v85 = vsel %vm83, 1, 0
    %v86 = vsel %vm84, 1, 0
    %v87 = vcvt.s32.f32 %v85
    %v88 = vcvt.s32.f32 %v86
    %v89 = vrot.slane %v87, 4
    %v90 = vadd.f32 %v87, %v89
    %v91 = vrot.slane %v90, 2
    %v92 = vadd.f32 %v90, %v91
    %v93 = vrot.slane %v92, 1
    %v94 = vadd.f32 %v92, %v93
    %v95 = vrot.slane %v88, 4
    %v96 = vadd.f32 %v88, %v95
    %v97 = vrot.slane %v96, 2
    %v98 = vadd.f32 %v96, %v97
    %v99 = vrot.slane %v98, 1
    %v100 = vadd.f32 %v98, %v99
    %v101 = vld [vmem:[#allocation5] sm:$0xff]
    %v102 = vld [vmem:[#allocation5 + $0x8] sm:$0xff]
    %v103 = vld [vmem:[#allocation5 + $0x10] sm:$0xff]
    %v104 = vld [vmem:[#allocation5 + $0x18] sm:$0xff]
    %v105 = vld [vmem:[#allocation5 + $0x20] sm:$0xff]
    %v106 = vld [vmem:[#allocation5 + $0x28] sm:$0xff]
    %v107 = vld [vmem:[#allocation5 + $0x30] sm:$0xff]
    %v108 = vld [vmem:[#allocation5 + $0x38] sm:$0xff]
    %v109 = vld [vmem:[#allocation5 + $0x40] sm:$0xff]
    %v110 = vld [vmem:[#allocation5 + $0x48] sm:$0xff]
    %v111 = vld [vmem:[#allocation5 + $0x50] sm:$0xff]
    %v112 = vld [vmem:[#allocation5 + $0x58] sm:$0xff]
    %v113 = vld [vmem:[#allocation5 + $0x60] sm:$0xff]
    %v114 = vld [vmem:[#allocation5 + $0x68] sm:$0xff]
    %v115 = vld [vmem:[#allocation5 + $0x70] sm:$0xff]
    %v116 = vld [vmem:[#allocation5 + $0x78] sm:$0xff]
    %vm119 = vcmask 1041409
    %v120 = vsel %vm119, %v100, %v94
    %122 = vmatprep.subr.mxu0 0.0
    %123 = vmatpush1.msra.mxu0 %v101
    %124 = vmatprep.subr.mxu0 0.0
    %125 = vmatpush1.msra.mxu0 %v102
    %126 = vmatprep.subr.mxu0 0.0
    %127 = vmatpush1.msra.mxu0 %v103
    %128 = vmatprep.subr.mxu0 0.0
    %129 = vmatpush1.msra.mxu0 %v104
    %130 = vmatprep.subr.mxu0 0.0
    %131 = vmatpush1.msra.mxu0 %v105
    %132 = vmatprep.subr.mxu0 0.0
    %133 = vmatpush1.msra.mxu0 %v106
    %134 = vmatprep.subr.mxu0 0.0
    %135 = vmatpush1.msra.mxu0 %v107
    %136 = vmatprep.subr.mxu0 0.0
    %137 = vmatpush1.msra.mxu0 %v108
    %138 = vmatprep.subr.mxu0 0.0
    %139 = vmatpush1.msra.mxu0 %v109
    %140 = vmatprep.subr.mxu0 0.0
    %141 = vmatpush1.msra.mxu0 %v110
    %142 = vmatprep.subr.mxu0 0.0
    %143 = vmatpush1.msra.mxu0 %v111
    %144 = vmatprep.subr.mxu0 0.0
    %145 = vmatpush1.msra.mxu0 %v112
    %146 = vmatprep.subr.mxu0 0.0
    %147 = vmatpush1.msra.mxu0 %v113
    %148 = vmatprep.subr.mxu0 0.0
    %149 = vmatpush1.msra.mxu0 %v114
    %150 = vmatprep.subr.mxu0 0.0
    %151 = vmatpush1.msra.mxu0 %v115
    %152 = vmatprep.subr.mxu0 0.0
    %153 = vmatpush1.msra.mxu0 %v116
    %154 = vmatprep.subr.mxu0 0.0
    %155 = vmatpush1.msra.mxu0 0.0
    %156 = vmatprep.subr.mxu0 0.0
    %157 = vmatpush1.msra.mxu0 0.0
    %158 = vmatprep.subr.mxu0 0.0
    %159 = vmatpush1.msra.mxu0 0.0
    %160 = vmatprep.subr.mxu0 0.0
    %161 = vmatpush1.msra.mxu0 0.0
    %162 = vmatprep.subr.mxu0 0.0
    %163 = vmatpush1.msra.mxu0 0.0
    %164 = vmatprep.subr.mxu0 0.0
    %165 = vmatpush1.msra.mxu0 0.0
    %166 = vmatprep.subr.mxu0 0.0
    %167 = vmatpush1.msra.mxu0 0.0
    %168 = vmatprep.subr.mxu0 0.0
    %169 = vmatpush1.msra.mxu0 0.0
    %170 = vmatprep.subr.mxu0 0.0
    %171 = vmatpush1.msra.mxu0 0.0
    %172 = vmatprep.subr.mxu0 0.0
    %173 = vmatpush1.msra.mxu0 0.0
    %174 = vmatprep.subr.mxu0 0.0
    %175 = vmatpush1.msra.mxu0 0.0
    %176 = vmatprep.subr.mxu0 0.0
    %177 = vmatpush1.msra.mxu0 0.0
    %178 = vmatprep.subr.mxu0 0.0
    %179 = vmatpush1.msra.mxu0 0.0
    %180 = vmatprep.subr.mxu0 0.0
    %181 = vmatpush1.msra.mxu0 0.0
    %182 = vmatprep.subr.mxu0 0.0
    %183 = vmatpush1.msra.mxu0 0.0
    %184 = vmatprep.subr.mxu0 0.0
    %185 = vmatpush1.msra.mxu0 0.0
    %186 = vmatprep.mubr.f32.mxu0 0.0
    %187 = vmatmul.mubr.f32.gmra.mrb[0].mxu0 %v120
    %v188 = vpop.f32.mrb[0].mxu0
    %v189 = vadd.f32 0.0, %v188
    %v190 = vpop.f32.mrb[0].mxu0
    %191 = vdwg.mxu0
    %v192 = vmul.f32 %v189, 0.125
    %v193 = vld [vmem:[%s2] sm:$0x1]
    %v194 = vld [vmem:[%s3] sm:$0x1]
    %v195 = vld [vmem:[%s4] sm:$0x1]
    %v196 = vld [vmem:[#allocation7] sm:$0xff]
    %v197 = vld [vmem:[#allocation7 + $0x8] sm:$0xff]
    %v198 = vld [vmem:[#allocation7 + $0x10] sm:$0xff]
    %v199 = vld [vmem:[#allocation7 + $0x18] sm:$0xff]
    %v200 = vld [vmem:[#allocation7 + $0x20] sm:$0xff]
    %v201 = vld [vmem:[#allocation7 + $0x28] sm:$0xff]
    %v202 = vld [vmem:[#allocation7 + $0x30] sm:$0xff]
    %v203 = vld [vmem:[#allocation7 + $0x38] sm:$0xff]
    %v204 = vld [vmem:[#allocation7 + $0x40] sm:$0xff]
    %v205 = vld [vmem:[#allocation7 + $0x48] sm:$0xff]
    %v206 = vld [vmem:[#allocation7 + $0x50] sm:$0xff]
    %v207 = vld [vmem:[#allocation7 + $0x58] sm:$0xff]
    %v208 = vld [vmem:[#allocation7 + $0x60] sm:$0xff]
    %v209 = vld [vmem:[#allocation7 + $0x68] sm:$0xff]
    %v210 = vld [vmem:[#allocation7 + $0x70] sm:$0xff]
    %v211 = vld [vmem:[#allocation7 + $0x78] sm:$0xff]
    %v212 = vld [vmem:[%s6] sm:$0x1]
    %v214 = vlaneseq
    %v215 = vshrl.u32 %v214, 7
    %v216 = vsub.s32 0, %v215
    %v217 = vrot.slane %v193, %v216
    %v219 = vadd.f32 %v192, %v217
    %v220 = vmax.f32 %v219, 0.0
    %vm221 = vcmask 1041408
    %v222 = vsel %vm221, %v220, 0.0
    %v223 = vrot.slane %v222, 4
    %v224 = vadd.f32 %v222, %v223
    %v225 = vrot.slane %v224, 2
    %v226 = vadd.f32 %v224, %v225
    %v227 = vrot.slane %v226, 1
    %v228 = vadd.f32 %v226, %v227
    %v229 = vrcp.pop 2.0
    %v230 = vmul.f32 %v228, %v229
    %v231 = vsub.f32 %v220, %v230
    %v232 = vmul.f32 %v231, %v231
    %v233 = vsel %vm221, %v232, 0.0
    %v234 = vrot.slane %v233, 4
    %v235 = vadd.f32 %v233, %v234
    %v236 = vrot.slane %v235, 2
    %v237 = vadd.f32 %v235, %v236
    %v238 = vrot.slane %v237, 1
    %v239 = vadd.f32 %v237, %v238
    %v240 = vmul.f32 %v239, %v229
    %v241 = vadd.f32 %v240, 1e-05
    %v242 = vrsqrt.pop %v241
    %v243 = vmul.f32 %v231, %v242
    %v245 = vlaneseq
    %v246 = vshrl.u32 %v245, 7
    %v247 = vsub.s32 0, %v246
    %v248 = vrot.slane %v194, %v247
    %v250 = vmul.f32 %v243, %v248
    %v252 = vlaneseq
    %v253 = vshrl.u32 %v252, 7
    %v254 = vsub.s32 0, %v253
    %v255 = vrot.slane %v195, %v254
    %v257 = vadd.f32 %v250, %v255
    %v259 = vlaneseq
    %v260 = vshrl.u32 %v259, 7
    %v261 = vsub.s32 0, %v260
    %v262 = vrot.slane %v212, %v261
    %264 = vmatprep.subr.mxu0 0.0
    %265 = vmatpush1.msra.mxu0 %v196
    %266 = vmatprep.subr.mxu0 0.0
    %267 = vmatpush1.msra.mxu0 %v197
    %268 = vmatprep.subr.mxu0 0.0
    %269 = vmatpush1.msra.mxu0 %v198
    %270 = vmatprep.subr.mxu0 0.0
    %271 = vmatpush1.msra.mxu0 %v199
    %272 = vmatprep.subr.mxu0 0.0
    %273 = vmatpush1.msra.mxu0 %v200
    %274 = vmatprep.subr.mxu0 0.0
    %275 = vmatpush1.msra.mxu0 %v201
    %276 = vmatprep.subr.mxu0 0.0
    %277 = vmatpush1.msra.mxu0 %v202
    %278 = vmatprep.subr.mxu0 0.0
    %279 = vmatpush1.msra.mxu0 %v203
    %280 = vmatprep.subr.mxu0 0.0
    %281 = vmatpush1.msra.mxu0 %v204
    %282 = vmatprep.subr.mxu0 0.0
    %283 = vmatpush1.msra.mxu0 %v205
    %284 = vmatprep.subr.mxu0 0.0
    %285 = vmatpush1.msra.mxu0 %v206
    %286 = vmatprep.subr.mxu0 0.0
    %287 = vmatpush1.msra.mxu0 %v207
    %288 = vmatprep.subr.mxu0 0.0
    %289 = vmatpush1.msra.mxu0 %v208
    %290 = vmatprep.subr.mxu0 0.0
    %291 = vmatpush1.msra.mxu0 %v209
    %292 = vmatprep.subr.mxu0 0.0
    %293 = vmatpush1.msra.mxu0 %v210
    %294 = vmatprep.subr.mxu0 0.0
    %295 = vmatpush1.msra.mxu0 %v211
    %296 = vmatprep.subr.mxu0 0.0
    %297 = vmatpush1.msra.mxu0 0.0
    %298 = vmatprep.subr.mxu0 0.0
    %299 = vmatpush1.msra.mxu0 0.0
    %300 = vmatprep.subr.mxu0 0.0
    %301 = vmatpush1.msra.mxu0 0.0
    %302 = vmatprep.subr.mxu0 0.0
    %303 = vmatpush1.msra.mxu0 0.0
    %304 = vmatprep.subr.mxu0 0.0
    %305 = vmatpush1.msra.mxu0 0.0
    %306 = vmatprep.subr.mxu0 0.0
    %307 = vmatpush1.msra.mxu0 0.0
    %308 = vmatprep.subr.mxu0 0.0
    %309 = vmatpush1.msra.mxu0 0.0
    %310 = vmatprep.subr.mxu0 0.0
    %311 = vmatpush1.msra.mxu0 0.0
    %312 = vmatprep.subr.mxu0 0.0
    %313 = vmatpush1.msra.mxu0 0.0
    %314 = vmatprep.subr.mxu0 0.0
    %315 = vmatpush1.msra.mxu0 0.0
    %316 = vmatprep.subr.mxu0 0.0
    %317 = vmatpush1.msra.mxu0 0.0
    %318 = vmatprep.subr.mxu0 0.0
    %319 = vmatpush1.msra.mxu0 0.0
    %320 = vmatprep.subr.mxu0 0.0
    %321 = vmatpush1.msra.mxu0 0.0
    %322 = vmatprep.subr.mxu0 0.0
    %323 = vmatpush1.msra.mxu0 0.0
    %324 = vmatprep.subr.mxu0 0.0
    %325 = vmatpush1.msra.mxu0 0.0
    %326 = vmatprep.subr.mxu0 0.0
    %327 = vmatpush1.msra.mxu0 0.0
    %328 = vmatprep.mubr.f32.mxu0 0.0
    %329 = vmatmul.mubr.f32.gmra.mrb[0].mxu0 %v257
    %v330 = vpop.f32.mrb[0].mxu0
    %v331 = vadd.f32 %v262, %v330
    %v332 = vpop.f32.mrb[0].mxu0
    %333 = vdwg.mxu0
    %334 = vst [vmem:[#allocation8] sm:$0x3] %v331
    // Predicated region
    $region42: #{tpu_custom_call.1} parent=1 // pred_check
      _
    $region43: #{tpu_custom_call.1} parent=1 // pred_check_branch
      %336 = sbr.rel (0) target = $region45
    $region44: #{tpu_custom_call.1} parent=1 // pred_region
      %s338 = ssub.s32 32, 32
      %339 = vsyncadd [#allocation4], %s338
      %s341 = sshll.u32 [#allocation8], 4
      %s342 = int_to_ptr.vmem [resolvable:$true] %s341
      %344 = dma.vmem_to_hbm [thread:$0]  %s342, 32, %s7, [#allocation4]
    $region45: #{tpu_custom_call.1} parent=1 // pred_fallthru
      _
    // Predicated region
    $region46: #{tpu_custom_call.1} parent=1 // pred_check
      _
    $region47: #{tpu_custom_call.1} parent=1 // pred_check_branch
      %346 = sbr.rel (0) target = $region49
    $region48: #{tpu_custom_call.1} parent=1 // pred_region
      %347 = dma.done [#allocation4], 32
    $region49: #{tpu_custom_call.1} parent=1 // pred_fallthru
      _
    %348 = vsyncpa [#allocation3], 1
    %349 = vsyncpa [#allocation6], 1
    %350 = vsyncpa [#allocation4], 1

</llo_original>
